<compile_context>
chip_gen: v5e
topology: v5e:2x2
jax: 0.10.0
libtpu: 0.0.40
codegen_flags: <defaults>
</compile_context>

<pallas_src>
import functools

import numpy as np
import jax
import jax.numpy as jnp
from jax.experimental import pallas as pl
from jax.experimental.pallas import tpu as pltpu

# ----------------------------------------------------------------------------
# Synthetic VOCAB (deterministic; only the shapes / special indices matter)
# ----------------------------------------------------------------------------
NUM_RNA_TYPE = 7          # 0=PAD 1=BOS 2=MASK 3..6 = A,G,C,U
BOS_IDX = 1
MASK_IDX = 2
SPECIAL_MASK = [1, 1, 1, 0, 0, 0, 0]
N_CHANNEL = 8             # VOCAB.MAX_ATOM_NUMBER
NUM_ATOM_TYPE = 8         # 0=pad 1=mask 2..7 real elements
ATOM_PAD_IDX = 0
ATOM_MASK_IDX = 1
NUM_ATOM_POS = 8          # 0=pad 1=mask 2=backbone 3..7 sidechain positions
ATOM_POS_PAD_IDX = 0
ATOM_POS_MASK_IDX = 1
ATOM_POS_BB = 2
MAX_RNA_POS = 64

BIGINT = 1e10             # invalid-distance fill (matches the torch reference)
PAD_SQ = 1e20             # pad-atom penalty in the squared-distance domain
FILL_SQ = 1e30            # invalid-pair fill in the squared-distance domain
MASKED_SQ = 1e35          # "already selected" fill during the k-min sweep
SQ_CUTOFF = 1e18          # any squared distance >= this is invalid
IDX_INF = 1e9             # larger than any node index (indices stay < 2^24)
LANE = 128
CSTRIDE = 8               # xyz padded to 8 per channel -> aligned MXU slices


def _round_up(x, m):
    return ((x + m - 1) // m) * m


def _build_vocab_tables():
    """Deterministic rna_atom_type / rna_atom_pos tables (shape [V, n_channel])."""
    backbone_types = [2, 3, 4]                       # P, C4', N1 (synthetic ids)
    sidechain = {
        3: ([5, 6, 7, 5], [3, 4, 5, 6]),
        4: ([5, 6, 7], [3, 4, 5]),
        5: ([6, 7], [3, 4]),
        6: ([5, 6, 7, 6, 5], [3, 4, 5, 6, 7]),
    }
    atype, apos = [], []
    for i in range(NUM_RNA_TYPE):
        if i in (BOS_IDX, MASK_IDX):
            atype.append([ATOM_MASK_IDX] * N_CHANNEL)
            apos.append([ATOM_POS_MASK_IDX] * N_CHANNEL)
        elif SPECIAL_MASK[i] == 1:
            atype.append([ATOM_PAD_IDX] * N_CHANNEL)
            apos.append([ATOM_POS_PAD_IDX] * N_CHANNEL)
        else:
            st, sp = sidechain[i]
            at = backbone_types + st
            ap = [ATOM_POS_BB] * len(backbone_types) + sp
            num_pad = N_CHANNEL - len(at)
            atype.append(at + [ATOM_PAD_IDX] * num_pad)
            apos.append(ap + [ATOM_POS_PAD_IDX] * num_pad)
    # TODO(synk): rna_coarse table of the reference is unused in forward() (and
    # ragged for the full-atom setting), so it is not reconstructed here.
    return np.array(atype, np.int32), np.array(apos, np.int32)


# ----------------------------------------------------------------------------
# Pallas kernel 1: folded embedding (one-hot @ fused table, lane-dense output)
# ----------------------------------------------------------------------------
def _embed_kernel(idx_ref, w_ref, h_ref):
    tm = idx_ref.shape[0]
    kw = w_ref.shape[0]
    iota = jax.lax.broadcasted_iota(jnp.int32, (tm, kw), 1)
    onehot = jnp.logical_or(iota == idx_ref[:, 0:1],
                            iota == idx_ref[:, 1:2]).astype(jnp.float32)
    h_ref[...] = jnp.dot(onehot, w_ref[...], preferred_element_type=jnp.float32)


def _embedding_pallas(fused_idx, table, *, tm=LANE):
    n_pad, _ = fused_idx.shape
    kw, dp = table.shape
    return pl.pallas_call(
        _embed_kernel,
        grid=(n_pad // tm,),
        in_specs=[pl.BlockSpec((tm, 2), lambda i: (i, 0)),
                  pl.BlockSpec((kw, dp), lambda i: (0, 0))],
        out_specs=pl.BlockSpec((tm, dp), lambda i: (i, 0)),
        out_shape=jax.ShapeDtypeStruct((n_pad, dp), jnp.float32),
        compiler_params=pltpu.CompilerParams(
            dimension_semantics=("parallel",)),
    )(fused_idx, table)


# ----------------------------------------------------------------------------
# Pallas kernel 2: MXU channel-pair-min distances + fused per-row k-smallest
# ----------------------------------------------------------------------------
def _dist_topk_kernel(rowc_ref, colc_ref, rowpen_ref, colpen_ref,
                      vrow_ref, vcol_ref, outd_ref, outi_ref,
                      cand_d_ref, cand_i_ref, *, k):
    j = pl.program_id(1)
    nj = pl.num_programs(1)
    tm = rowc_ref.shape[0]
    tn = colc_ref.shape[1]
    c = rowpen_ref.shape[1]
    cs = rowc_ref.shape[1] // c
    nb = cand_d_ref.shape[1] - tn     # lanes reserved for the running top-k (=128)

    @pl.when(j == 0)
    def _():
        cand_d_ref[...] = jnp.full(cand_d_ref.shape, FILL_SQ, cand_d_ref.dtype)
        cand_i_ref[...] = jnp.zeros(cand_i_ref.shape, cand_i_ref.dtype)

    rowc = rowc_ref[...]              # [TM, C*8]   row coords (xyz+0 pad per channel)
    colc = colc_ref[...]              # [C*8, TN]   -2 * column coords
    rowpen = rowpen_ref[...]          # [TM, C]     ||x_i,c||^2 + pad penalty
    colpen = colpen_ref[...]          # [C, TN]     ||x_j,c||^2 + pad penalty

    # d^2 = ||a||^2 + ||b||^2 - 2 a.b; cross terms on the MXU, norms/penalties
    # pre-folded -> only 1 add + 1 min per channel pair on the VPU.
    def pair_min(c1):
        a = rowc[:, c1 * cs:(c1 + 1) * cs]                       # [TM, 8]
        inner = functools.reduce(
            jnp.minimum,
            [jnp.dot(a, colc[c2 * cs:(c2 + 1) * cs, :],
                     preferred_element_type=jnp.float32,
                     precision=jax.lax.Precision.HIGHEST)
             + colpen[c2:c2 + 1, :]
             for c2 in range(c)])
        return inner + rowpen[:, c1:c1 + 1]

    best = functools.reduce(jnp.minimum, [pair_min(c1) for c1 in range(c)])

    # batch / global-node / row-pad masking folded into one int compare.
    valid = vrow_ref[...] == vcol_ref[...]            # [TM,1]==[1,TN] -> [TM,TN]
    best = jnp.where(valid, best, jnp.float32(FILL_SQ))

    # merge this tile's columns into the running per-row k-min (scratch lanes
    # [0,k) hold the running best; lanes [nb, nb+tn) stage the new candidates).
    lane_i = jax.lax.broadcasted_iota(jnp.int32, (tm, tn), 1)
    cand_d_ref[:, nb:] = best
    cand_i_ref[:, nb:] = (j * tn + lane_i).astype(jnp.float32)
    cand_d = cand_d_ref[...]
    cand_i = cand_i_ref[...]
    for t in range(k):                                 # static unroll, k small
        m = jnp.min(cand_d, axis=1, keepdims=True)
        idx = jnp.min(jnp.where(cand_d == m, cand_i, jnp.float32(IDX_INF)),
                      axis=1, keepdims=True)
        cand_d_ref[:, t:t + 1] = m
        cand_i_ref[:, t:t + 1] = idx
        sel = jnp.logical_and(cand_d == m, cand_i == idx)
        cand_d = jnp.where(sel, jnp.float32(MASKED_SQ), cand_d)

    @pl.when(j == nj - 1)
    def _():
        dk = cand_d_ref[:, 0:nb]                       # lane-dense [TM, 128] block
        outd_ref[...] = jnp.where(dk >= jnp.float32(SQ_CUTOFF),
                                  jnp.float32(BIGINT),
                                  jnp.sqrt(jnp.maximum(dk, 0.0)))
        outi_ref[...] = cand_i_ref[:, 0:nb].astype(jnp.int32)


def _knn_topk_pallas(X, atom_pos, batch_id, S, k):
    """Returns (dist [N,k], idx [N,k]) of the k nearest in-batch, non-global
    neighbours per node; invalid slots hold exactly BIGINT."""
    n, c, _ = X.shape
    assert 1 <= k <= LANE, "k_neighbors must be a small static int (<=128)"
    tm = LANE                                          # row axis: 'parallel'
    tn = LANE if n <= LANE else (2 * LANE if n <= 4096 else 4 * LANE)
    n_pad = _round_up(n, tn)
    assert n_pad < (1 << 24)                           # f32-exact column indices

    xf = X.astype(jnp.float32)
    xf = xf - jnp.mean(xf.reshape(-1, 3), axis=0)      # centring tames cancellation

    # row coords [Npad, C*8] and -2x column coords [C*8, Npad]
    x8 = jnp.pad(xf, ((0, 0), (0, 0), (0, CSTRIDE - 3)))            # [N, C, 8]
    rowc = jnp.pad(x8.reshape(n, c * CSTRIDE), ((0, n_pad - n), (0, 0)))
    colc = jnp.pad((-2.0 * x8).transpose(1, 2, 0).reshape(c * CSTRIDE, n),
                   ((0, 0), (0, n_pad - n)))

    # per-atom squared norms + pad-atom penalty folded into one plane per side
    sq = jnp.sum(xf * xf, axis=-1)                                   # [N, C]
    pen = (atom_pos.astype(jnp.int32) == ATOM_POS_PAD_IDX).astype(jnp.float32)
    rowpen = jnp.pad(sq + pen * jnp.float32(PAD_SQ), ((0, n_pad - n), (0, 0)))
    colpen = rowpen.T                                                # [C, Npad]

    is_pad = jnp.arange(n_pad, dtype=jnp.int32) >= n
    bid = jnp.pad(batch_id.astype(jnp.int32), (0, n_pad - n))
    s_pad = jnp.pad(S.astype(jnp.int32), (0, n_pad - n))
    invalid = jnp.logical_or(is_pad, s_pad == BOS_IDX)
    vrow = jnp.where(invalid, -1, bid).reshape(n_pad, 1)             # never match
    vcol = jnp.where(invalid, -2, bid).reshape(1, n_pad)

    kernel = functools.partial(_dist_topk_kernel, k=k)
    outd, outi = pl.pallas_call(
        kernel,
        grid=(n_pad // tm, n_pad // tn),
        in_specs=[
            pl.BlockSpec((tm, c * CSTRIDE), lambda i, j: (i, 0)),
            pl.BlockSpec((c * CSTRIDE, tn), lambda i, j: (0, j)),
            pl.BlockSpec((tm, c), lambda i, j: (i, 0)),
            pl.BlockSpec((c, tn), lambda i, j: (0, j)),
            pl.BlockSpec((tm, 1), lambda i, j: (i, 0)),
            pl.BlockSpec((1, tn), lambda i, j: (0, j)),
        ],
        out_specs=(pl.BlockSpec((tm, LANE), lambda i, j: (i, 0)),
                   pl.BlockSpec((tm, LANE), lambda i, j: (i, 0))),
        out_shape=(jax.ShapeDtypeStruct((n_pad, LANE), jnp.float32),
                   jax.ShapeDtypeStruct((n_pad, LANE), jnp.int32)),
        # running top-k scratch: 2 x (TM, 128+TN) f32 -> < 1 MiB, fits every gen.
        scratch_shapes=[pltpu.VMEM((tm, LANE + tn), jnp.float32),
                        pltpu.VMEM((tm, LANE + tn), jnp.float32)],
        compiler_params=pltpu.CompilerParams(
            dimension_semantics=("parallel", "arbitrary")),   # keep carry axis last
    )(rowc, colc, rowpen, colpen, vrow, vcol)
    return outd[:n, :k], outi[:n, :k]


# ----------------------------------------------------------------------------
# Host glue: O(N) edge assembly (torch.nonzero / masked_select equivalents)
# ----------------------------------------------------------------------------
# TODO(synk): dynamic-size edge assembly has no clean Pallas equivalent; it
# stays host-side numpy, but now O(N) per batch segment instead of dense O(N^2).
def _global_edges_np(S_np, batch_np):
    N = S_np.shape[0]
    is_global = S_np == BOS_IDX
    idx = np.arange(N, dtype=np.int64)
    rows, cols = [], []
    for b in np.unique(batch_np):
        seg = idx[batch_np == b]
        g = seg[is_global[seg]]
        if g.size == 0:
            continue
        ng = seg[~is_global[seg]]
        rows.append(np.repeat(g, seg.size))
        cols.append(np.tile(seg, g.size))
        rows.append(np.repeat(ng, g.size))
        cols.append(np.tile(g, ng.size))
    if rows:
        return np.stack([np.concatenate(rows), np.concatenate(cols)]).astype(np.int64)
    return np.zeros((2, 0), np.int64)


def _seq_edges_np(S_np, batch_np):
    N = S_np.shape[0]
    is_global = S_np == BOS_IDX
    i0 = np.arange(N - 1, dtype=np.int64)
    i1 = i0 + 1
    ok = (batch_np[i0] == batch_np[i1]) & ~is_global[i0] & ~is_global[i1]
    a, b = i0[ok], i1[ok]
    return np.stack([np.concatenate([b, a]),
                     np.concatenate([a, b])]).astype(np.int64)


def _inner_edges_np(dist_np, dst_np, sec_np, k):
    N = dist_np.shape[0]
    src = np.repeat(np.arange(N, dtype=np.int64), k)
    dst = dst_np.reshape(-1).astype(np.int64)
    vals = dist_np.reshape(-1)
    valid = vals < BIGINT
    src, dst = src[valid], dst[valid]
    keep = sec_np[src] == sec_np[dst]          # sec_pos filter from construct_edges
    return np.stack([src[keep], dst[keep]]).astype(np.int64)


# ----------------------------------------------------------------------------
# Module port
# ----------------------------------------------------------------------------
class NucleicAcidFeaturePallas:
    def __init__(self, embed_size=32):
        self.embed_size = embed_size
        self.bos_idx = BOS_IDX
        self.mask_idx = MASK_IDX
        self.atom_pos_pad_idx = ATOM_POS_PAD_IDX
        at, ap = _build_vocab_tables()
        self.rna_atom_type = jnp.asarray(at)        # [V, n_channel]
        self.rna_atom_pos = jnp.asarray(ap)         # [V, n_channel]
        k0, k1, k2, k3 = jax.random.split(jax.random.PRNGKey(0), 4)
        # TODO(synk): `self.rna_embedding` is never defined in the reference
        # __init__; synthesized here as 4 learned tables (type/pos/atom/atom-pos).
        self.e_rna = 0.1 * jax.random.normal(k0, (NUM_RNA_TYPE, embed_size), jnp.float32)
        self.e_pos = 0.1 * jax.random.normal(k1, (MAX_RNA_POS, embed_size), jnp.float32)
        self.e_at = 0.1 * jax.random.normal(k2, (NUM_ATOM_TYPE, embed_size), jnp.float32)
        self.e_ap = 0.1 * jax.random.normal(k3, (NUM_ATOM_POS, embed_size), jnp.float32)

        # Exact algebraic fold of the per-channel atom-count branch:
        # cnt_at[v,t] = #channels of vocab entry v with atom type t (ditto pos).
        cnt_at = np.zeros((NUM_RNA_TYPE, NUM_ATOM_TYPE), np.float32)
        cnt_ap = np.zeros((NUM_RNA_TYPE, NUM_ATOM_POS), np.float32)
        for v in range(NUM_RNA_TYPE):
            for ch in range(N_CHANNEL):
                cnt_at[v, at[v, ch]] += 1.0
                cnt_ap[v, ap[v, ch]] += 1.0
        t_tab = (np.asarray(self.e_rna)
                 + (cnt_at @ np.asarray(self.e_at)
                    + cnt_ap @ np.asarray(self.e_ap)) / N_CHANNEL)
        # Fused, lane-dense weight table: rows [0,7) = folded type table,
        # rows [7,71) = position table, zero-padded to [128, 128].
        kw = _round_up(NUM_RNA_TYPE + MAX_RNA_POS, LANE)
        dp = _round_up(embed_size, LANE)
        w = np.zeros((kw, dp), np.float32)
        w[:NUM_RNA_TYPE, :embed_size] = t_tab
        w[NUM_RNA_TYPE:NUM_RNA_TYPE + MAX_RNA_POS, :embed_size] = np.asarray(self.e_pos)
        self.embed_table = jnp.asarray(w)

    def _is_global(self, S):
        return S == self.bos_idx

    def _construct_rna_pos(self, S):
        # equivalent closed form of the shift/cumsum construction in the reference
        N = S.shape[0]
        is_g = self._is_global(S)
        idx = jnp.arange(N, dtype=jnp.int32)
        m = jax.lax.cummax(jnp.where(is_g, idx, jnp.int32(-1)), axis=0)
        g0 = jnp.argmax(is_g).astype(jnp.int32)
        return jnp.where(m < 0, idx + 1, g0 + 1 + idx - m).astype(jnp.int32)

    def embedding(self, S):
        n = S.shape[0]
        rna_pos = self._construct_rna_pos(S)
        atom_type = self.rna_atom_type[S]
        atom_pos = self.rna_atom_pos[S]
        # TODO(synk): rna_pos is clamped to MAX_RNA_POS-1 for the position table;
        # nn.Embedding in the reference would error on out-of-range positions.
        pos_idx = NUM_RNA_TYPE + jnp.clip(rna_pos, 0, MAX_RNA_POS - 1)
        fused = jnp.stack([S.astype(jnp.int32), pos_idx.astype(jnp.int32)], axis=1)
        n_pad = _round_up(n, LANE)
        fused = jnp.pad(fused, ((0, n_pad - n), (0, 0)))
        h_pad = _embedding_pallas(fused, self.embed_table)
        H = h_pad[:n, :self.embed_size]
        return H, (rna_pos, atom_type, atom_pos)

    def construct_edges(self, X, S, sec_pos, batch_id, k_neighbors, atom_pos=None):
        if atom_pos is None:
            atom_pos = self.rna_atom_pos[S]
        # launch device work first; assemble O(N) global/seq edges on host while
        # the kernel runs, and only sync when consuming the k-NN result.
        topk_d, topk_i = _knn_topk_pallas(X, atom_pos, batch_id, S, k_neighbors)
        S_np = np.asarray(S)
        batch_np = np.asarray(batch_id)
        sec_np = np.asarray(sec_pos)
        global_normal = _global_edges_np(S_np, batch_np)
        seq_edges = _seq_edges_np(S_np, batch_np)
        dist_np = np.asarray(jax.block_until_ready(topk_d))
        dst_np = np.asarray(topk_i)
        inner_edges = _inner_edges_np(dist_np, dst_np, sec_np, k_neighbors)
        ctx_edges = np.concatenate([inner_edges, global_normal, seq_edges], axis=1)
        return ctx_edges, global_normal

    def forward(self, X, S, sec_pos, batch_id, k_neighbors):
        # NOTE: the reference forward() drops sec_pos when calling construct_edges
        # (which would raise a TypeError); we take sec_pos explicitly.
        H, (_, _, atom_pos) = self.embedding(S)
        ctx_edges = self.construct_edges(X, S, sec_pos, batch_id, k_neighbors,
                                         atom_pos=atom_pos)
        return H, ctx_edges


# ----------------------------------------------------------------------------
# Pure numpy references (sanity checks)
# ----------------------------------------------------------------------------
def _dist_reference(Xnp, ap_np, batch_np, S_np):
    N, C, _ = Xnp.shape
    pad = ap_np == ATOM_POS_PAD_IDX
    out = np.full((N, N), BIGINT, dtype=np.float64)
    for i in range(N):
        for j in range(N):
            if batch_np[i] != batch_np[j] or S_np[i] == BOS_IDX or S_np[j] == BOS_IDX:
                continue
            diff = Xnp[i][:, None, :] - Xnp[j][None, :, :]
            d = np.sqrt((diff * diff).sum(-1))
            d = d + (pad[i][:, None] | pad[j][None, :]) * BIGINT
            out[i, j] = d.min()
    return out


if __name__ == "__main__":
    # two batch items (chains) of lengths 6 and 7, each starting with a BOS node
    lengths = [6, 7]
    S_list = []
    for L in lengths:
        S_list.append(BOS_IDX)
        for t in range(L - 1):
            S_list.append(3 + (t % 4))
    S_np = np.array(S_list, np.int32)
    N = S_np.shape[0]
    batch_np = np.repeat(np.arange(len(lengths)), lengths).astype(np.int32)
    sec_np = np.array([0, 0, 0, 1, 1, 1, 0, 0, 0, 0, 1, 1, 1], np.int32)
    assert sec_np.shape[0] == N

    key = jax.random.PRNGKey(0)
    X = 3.0 * jax.random.normal(jax.random.fold_in(key, 7), (N, N_CHANNEL, 3), jnp.float32)
    S = jnp.asarray(S_np)
    batch_id = jnp.asarray(batch_np)
    sec_pos = jnp.asarray(sec_np)
    k_neighbors = 4

    feat = NucleicAcidFeaturePallas(embed_size=32)
    H, (ctx_edges, global_normal) = feat.forward(X, S, sec_pos, batch_id, k_neighbors)
    H = jax.block_until_ready(H)

    # ---- sanity checks ----
    atom_pos_np = np.asarray(feat.rna_atom_pos)[S_np]
    atom_type_np = np.asarray(feat.rna_atom_type)[S_np]
    rna_pos_np = np.asarray(feat._construct_rna_pos(S))

    e_rna = np.asarray(feat.e_rna); e_pos = np.asarray(feat.e_pos)
    e_at = np.asarray(feat.e_at); e_ap = np.asarray(feat.e_ap)
    H_ref = (e_rna[S_np] + e_pos[rna_pos_np]
             + (e_at[atom_type_np].sum(1) + e_ap[atom_pos_np].sum(1)) / N_CHANNEL)
    np.testing.assert_allclose(np.asarray(H), H_ref, rtol=2e-2, atol=2e-2)

    # fused distance + k-min kernel vs dense numpy reference
    # (norm-trick cancellation bounds: ~3e-2 absolute near d=0, ~1e-3 relative otherwise)
    topk_d, topk_i = _knn_topk_pallas(X, jnp.asarray(atom_pos_np), batch_id,
                                      S, k_neighbors)
    topk_d = np.asarray(jax.block_until_ready(topk_d))
    topk_i = np.asarray(topk_i)
    dist_ref = _dist_reference(np.asarray(X).astype(np.float64),
                               atom_pos_np, batch_np, S_np)
    for i in range(N):
        kv = np.sort(topk_d[i][topk_d[i] < BIGINT])
        rv = np.sort(dist_ref[i][dist_ref[i] < BIGINT])[:k_neighbors]
        assert kv.shape[0] == min(k_neighbors, rv.shape[0])
        np.testing.assert_allclose(kv, rv[:kv.shape[0]], rtol=1e-3, atol=3e-2)
        for d_val, j_idx in zip(topk_d[i], topk_i[i]):
            if d_val < BIGINT:
                np.testing.assert_allclose(d_val, dist_ref[i, j_idx],
                                           rtol=1e-3, atol=3e-2)

    assert H.shape == (N, 32) and H.dtype == jnp.float32
    assert ctx_edges.dtype == np.int64 and ctx_edges.shape[0] == 2
    assert global_normal.shape[0] == 2
    assert ctx_edges.size > 0 and ctx_edges.min() >= 0 and ctx_edges.max() < N

    print("KERNEL_OK")
</pallas_src>

<mosaic_0001>
module attributes {stable_mosaic.version = 11 : i64} {
  func.func @_embed_kernel(%arg0: i32, %arg1: memref<128x2xi32, #tpu.memory_space<vmem>>, %arg2: memref<128x128xf32, #tpu.memory_space<vmem>>, %arg3: memref<128x128xf32, #tpu.memory_space<vmem>>) attributes {dimension_semantics = [#tpu.dimension_semantics<parallel>], iteration_bounds = array<i64: 1>, scalar_prefetch = 0 : i64, scratch_operands = 0 : i64, tpu.core_type = #tpu.core_type<tc>, window_params = [{transform_indices = @transform_0, window_bounds = array<i64: 128, 2>}, {pipeline_mode = #tpu.pipeline_mode<synchronous>, transform_indices = @transform_1, window_bounds = array<i64: 128, 128>}, {transform_indices = @transform_2, window_bounds = array<i64: 128, 128>}]} {
    %0 = tpu.iota {dimensions = array<i32: 1>} : vector<128x128xi32>
    %c0 = arith.constant 0 : index
    %c0_0 = arith.constant 0 : index
    %1 = vector.load %arg1[%c0, %c0_0] : memref<128x2xi32, #tpu.memory_space<vmem>>, vector<128x1xi32>
    %2 = vector.broadcast %1 : vector<128x1xi32> to vector<128x128xi32>
    %3 = arith.cmpi eq, %0, %2 : vector<128x128xi32>
    %c0_1 = arith.constant 0 : index
    %c1 = arith.constant 1 : index
    %4 = vector.load %arg1[%c0_1, %c1] : memref<128x2xi32, #tpu.memory_space<vmem>>, vector<128x1xi32>
    %5 = vector.broadcast %4 : vector<128x1xi32> to vector<128x128xi32>
    %6 = arith.cmpi eq, %0, %5 : vector<128x128xi32>
    %7 = arith.ori %3, %6 : vector<128x128xi1>
    %8 = arith.extui %7 : vector<128x128xi1> to vector<128x128xi32>
    %9 = arith.sitofp %8 : vector<128x128xi32> to vector<128x128xf32>
    %c0_2 = arith.constant 0 : index
    %c0_3 = arith.constant 0 : index
    %10 = vector.load %arg2[%c0_2, %c0_3] : memref<128x128xf32, #tpu.memory_space<vmem>>, vector<128x128xf32>
    %cst = arith.constant dense<0.000000e+00> : vector<128x128xf32>
    %11 = tpu.matmul %9, %10, %cst {dimension_numbers = #tpu.dot_dimension_numbers<[1], [0], [0], [1], [0, 0, 1, 1], [], []>} : vector<128x128xf32>, vector<128x128xf32>, vector<128x128xf32> -> vector<128x128xf32>
    %c0_4 = arith.constant 0 : index
    %c0_5 = arith.constant 0 : index
    %12 = vector.load %arg3[%c0_4, %c0_5] : memref<128x128xf32, #tpu.memory_space<vmem>>, vector<128x128xf32>
    tpu.vector_store %arg3[%c0_4, %c0_5], %11 {strides = array<i32>} : memref<128x128xf32, #tpu.memory_space<vmem>>, vector<128x128xf32>,
    return
  }
  func.func @transform_0(%arg0: i32) -> (i32, i32) {
    %c0_i32 = arith.constant 0 : i32
    %c0_i32_0 = arith.constant 0 : i32
    return %arg0, %c0_i32 : i32, i32
  }
  func.func @transform_1(%arg0: i32) -> (i32, i32) {
    %c0_i32 = arith.constant 0 : i32
    %c0_i32_0 = arith.constant 0 : i32
    %c0_i32_1 = arith.constant 0 : i32
    return %c0_i32, %c0_i32_0 : i32, i32
  }
  func.func @transform_2(%arg0: i32) -> (i32, i32) {
    %c0_i32 = arith.constant 0 : i32
    %c0_i32_0 = arith.constant 0 : i32
    return %arg0, %c0_i32 : i32, i32
  }
}

</mosaic_0001>

<llo_original>
// kernel: tpu_custom_call.1
$region0: #{tpu_custom_call.1}
  #allocation0 [shape = 'u32[]', space=smem, size = 0x4, offset = 0x4, fixed_abs, tag = 'smem constant byte address 0x4 - core index']
  #allocation1 [shape = 'u32[72,128]{1,0:T(1,128)}', space=vmem, size = 0x9000, scoped, tag = 'internal scratch']
  %s0 = inlined_call_operand.vmem [shape: s32[128,2], index: 0, kind: input, shape index: {}]
  %s1 = inlined_call_operand.vmem [shape: f32[128,128], index: 1, kind: input, shape index: {}]
  %s2 = inlined_call_operand.hbm [shape: f32[128,128], index: 2, kind: output, shape index: {}]
  %s3 = sld [smem:[#allocation0]]
  $region18: #{tpu_custom_call.1} parent=0
    _
  %s5 = ssub.s32 1, %s3
  %s6 = scalar_select 0, %s5, %s3
  $region1: #{tpu_custom_call.1} parent=0
    #allocation2 [shape = 'u8[65536]{0}', space=vmem, size = 0x10000, scoped, tag = 'output window, operand 0, single buffered']
    #allocation3 [shape = 's32[1]{0}', space=sflag, size = 0x4, scoped, tag = 'scoped memory for tpu_custom_call.1']
    %7 = vsyncpa [#allocation3], 0
    // Predicated region
    $region2: #{tpu_custom_call.1} parent=1 // pred_check
      _
    $region3: #{tpu_custom_call.1} parent=1 // pred_check_branch
      %9 = sbr.rel (0) target = $region5
    $region4: #{tpu_custom_call.1} parent=1 // pred_region
      _
    $region5: #{tpu_custom_call.1} parent=1 // pred_fallthru
      _
    // Predicated region
    $region6: #{tpu_custom_call.1} parent=1 // pred_check
      _
    $region7: #{tpu_custom_call.1} parent=1 // pred_check_branch
      %11 = sbr.rel (0) target = $region9
    $region8: #{tpu_custom_call.1} parent=1 // pred_region
      _
    $region9: #{tpu_custom_call.1} parent=1 // pred_fallthru
      _
    %v12 = vlaneseq
    %v13 = vand.u32 %v12, 127
    %v14 = vld [vmem:[%s0] sm:$0xff]
    %v15 = vld [vmem:[%s0 + $0x8] sm:$0xff]
    %v16 = vld [vmem:[%s0 + $0x10] sm:$0xff]
    %v17 = vld [vmem:[%s0 + $0x18] sm:$0xff]
    %v18 = vld [vmem:[%s0 + $0x20] sm:$0xff]
    %v19 = vld [vmem:[%s0 + $0x28] sm:$0xff]
    %v20 = vld [vmem:[%s0 + $0x30] sm:$0xff]
    %v21 = vld [vmem:[%s0 + $0x38] sm:$0xff]
    %v22 = vld [vmem:[%s0 + $0x40] sm:$0xff]
    %v23 = vld [vmem:[%s0 + $0x48] sm:$0xff]
    %v24 = vld [vmem:[%s0 + $0x50] sm:$0xff]
    %v25 = vld [vmem:[%s0 + $0x58] sm:$0xff]
    %v26 = vld [vmem:[%s0 + $0x60] sm:$0xff]
    %v27 = vld [vmem:[%s0 + $0x68] sm:$0xff]
    %v28 = vld [vmem:[%s0 + $0x70] sm:$0xff]
    %v29 = vld [vmem:[%s0 + $0x78] sm:$0xff]
    %30 = vset.pattern.permute.xlu0 0
    %31 = vperm.xlu0 %30, %v14
    %v32 = vpop.permute.xlu0 %31
    %33 = vset.pattern.permute.xlu0 0
    %34 = vperm.xlu0 %33, %v15
    %v35 = vpop.permute.xlu0 %34
    %36 = vset.pattern.permute.xlu0 0
    %37 = vperm.xlu0 %36, %v16
    %v38 = vpop.permute.xlu0 %37
    %39 = vset.pattern.permute.xlu0 0
    %40 = vperm.xlu0 %39, %v17
    %v41 = vpop.permute.xlu0 %40
    %42 = vset.pattern.permute.xlu0 0
    %43 = vperm.xlu0 %42, %v18
    %v44 = vpop.permute.xlu0 %43
    %45 = vset.pattern.permute.xlu0 0
    %46 = vperm.xlu0 %45, %v19
    %v47 = vpop.permute.xlu0 %46
    %48 = vset.pattern.permute.xlu0 0
    %49 = vperm.xlu0 %48, %v20
    %v50 = vpop.permute.xlu0 %49
    %51 = vset.pattern.permute.xlu0 0
    %52 = vperm.xlu0 %51, %v21
    %v53 = vpop.permute.xlu0 %52
    %54 = vset.pattern.permute.xlu0 0
    %55 = vperm.xlu0 %54, %v22
    %v56 = vpop.permute.xlu0 %55
    %57 = vset.pattern.permute.xlu0 0
    %58 = vperm.xlu0 %57, %v23
    %v59 = vpop.permute.xlu0 %58
    %60 = vset.pattern.permute.xlu0 0
    %61 = vperm.xlu0 %60, %v24
    %v62 = vpop.permute.xlu0 %61
    %63 = vset.pattern.permute.xlu0 0
    %64 = vperm.xlu0 %63, %v25
    %v65 = vpop.permute.xlu0 %64
    %66 = vset.pattern.permute.xlu0 0
    %67 = vperm.xlu0 %66, %v26
    %v68 = vpop.permute.xlu0 %67
    %69 = vset.pattern.permute.xlu0 0
    %70 = vperm.xlu0 %69, %v27
    %v71 = vpop.permute.xlu0 %70
    %72 = vset.pattern.permute.xlu0 0
    %73 = vperm.xlu0 %72, %v28
    %v74 = vpop.permute.xlu0 %73
    %75 = vset.pattern.permute.xlu0 0
    %76 = vperm.xlu0 %75, %v29
    %v77 = vpop.permute.xlu0 %76
    %vm78 = vcmp.eq.s32.totalorder %v13, %v32
    %vm79 = vcmp.eq.s32.totalorder %v13, %v35
    %vm80 = vcmp.eq.s32.totalorder %v13, %v38
    %vm81 = vcmp.eq.s32.totalorder %v13, %v41
    %vm82 = vcmp.eq.s32.totalorder %v13, %v44
    %vm83 = vcmp.eq.s32.totalorder %v13, %v47
    %vm84 = vcmp.eq.s32.totalorder %v13, %v50
    %vm85 = vcmp.eq.s32.totalorder %v13, %v53
    %vm86 = vcmp.eq.s32.totalorder %v13, %v56
    %vm87 = vcmp.eq.s32.totalorder %v13, %v59
    %vm88 = vcmp.eq.s32.totalorder %v13, %v62
    %vm89 = vcmp.eq.s32.totalorder %v13, %v65
    %vm90 = vcmp.eq.s32.totalorder %v13, %v68
    %vm91 = vcmp.eq.s32.totalorder %v13, %v71
    %vm92 = vcmp.eq.s32.totalorder %v13, %v74
    %vm93 = vcmp.eq.s32.totalorder %v13, %v77
    %94 = vset.pattern.permute.xlu0 1
    %95 = vperm.xlu0 %94, %v14
    %v96 = vpop.permute.xlu0 %95
    %97 = vset.pattern.permute.xlu0 1
    %98 = vperm.xlu0 %97, %v15
    %v99 = vpop.permute.xlu0 %98
    %100 = vset.pattern.permute.xlu0 1
    %101 = vperm.xlu0 %100, %v16
    %v102 = vpop.permute.xlu0 %101
    %103 = vset.pattern.permute.xlu0 1
    %104 = vperm.xlu0 %103, %v17
    %v105 = vpop.permute.xlu0 %104
    %106 = vset.pattern.permute.xlu0 1
    %107 = vperm.xlu0 %106, %v18
    %v108 = vpop.permute.xlu0 %107
    %109 = vset.pattern.permute.xlu0 1
    %110 = vperm.xlu0 %109, %v19
    %v111 = vpop.permute.xlu0 %110
    %112 = vset.pattern.permute.xlu0 1
    %113 = vperm.xlu0 %112, %v20
    %v114 = vpop.permute.xlu0 %113
    %115 = vset.pattern.permute.xlu0 1
    %116 = vperm.xlu0 %115, %v21
    %v117 = vpop.permute.xlu0 %116
    %118 = vset.pattern.permute.xlu0 1
    %119 = vperm.xlu0 %118, %v22
    %v120 = vpop.permute.xlu0 %119
    %121 = vset.pattern.permute.xlu0 1
    %122 = vperm.xlu0 %121, %v23
    %v123 = vpop.permute.xlu0 %122
    %124 = vset.pattern.permute.xlu0 1
    %125 = vperm.xlu0 %124, %v24
    %v126 = vpop.permute.xlu0 %125
    %127 = vset.pattern.permute.xlu0 1
    %128 = vperm.xlu0 %127, %v25
    %v129 = vpop.permute.xlu0 %128
    %130 = vset.pattern.permute.xlu0 1
    %131 = vperm.xlu0 %130, %v26
    %v132 = vpop.permute.xlu0 %131
    %133 = vset.pattern.permute.xlu0 1
    %134 = vperm.xlu0 %133, %v27
    %v135 = vpop.permute.xlu0 %134
    %136 = vset.pattern.permute.xlu0 1
    %137 = vperm.xlu0 %136, %v28
    %v138 = vpop.permute.xlu0 %137
    %139 = vset.pattern.permute.xlu0 1
    %140 = vperm.xlu0 %139, %v29
    %v141 = vpop.permute.xlu0 %140
    %vm142 = vcmp.eq.s32.totalorder %v13, %v96
    %vm143 = vcmp.eq.s32.totalorder %v13, %v99
    %vm144 = vcmp.eq.s32.totalorder %v13, %v102
    %vm145 = vcmp.eq.s32.totalorder %v13, %v105
    %vm146 = vcmp.eq.s32.totalorder %v13, %v108
    %vm147 = vcmp.eq.s32.totalorder %v13, %v111
    %vm148 = vcmp.eq.s32.totalorder %v13, %v114
    %vm149 = vcmp.eq.s32.totalorder %v13, %v117
    %vm150 = vcmp.eq.s32.totalorder %v13, %v120
    %vm151 = vcmp.eq.s32.totalorder %v13, %v123
    %vm152 = vcmp.eq.s32.totalorder %v13, %v126
    %vm153 = vcmp.eq.s32.totalorder %v13, %v129
    %vm154 = vcmp.eq.s32.totalorder %v13, %v132
    %vm155 = vcmp.eq.s32.totalorder %v13, %v135
    %vm156 = vcmp.eq.s32.totalorder %v13, %v138
    %vm157 = vcmp.eq.s32.totalorder %v13, %v141
    %vm158 = vmor %vm78, %vm142
    %vm159 = vmor %vm79, %vm143
    %vm160 = vmor %vm80, %vm144
    %vm161 = vmor %vm81, %vm145
    %vm162 = vmor %vm82, %vm146
    %vm163 = vmor %vm83, %vm147
    %vm164 = vmor %vm84, %vm148
    %vm165 = vmor %vm85, %vm149
    %vm166 = vmor %vm86, %vm150
    %vm167 = vmor %vm87, %vm151
    %vm168 = vmor %vm88, %vm152
    %vm169 = vmor %vm89, %vm153
    %vm170 = vmor %vm90, %vm154
    %vm171 = vmor %vm91, %vm155
    %vm172 = vmor %vm92, %vm156
    %vm173 = vmor %vm93, %vm157
    %v174 = vsel %vm158, 1, 0
    %v175 = vsel %vm159, 1, 0
    %v176 = vsel %vm160, 1, 0
    %v177 = vsel %vm161, 1, 0
    %v178 = vsel %vm162, 1, 0
    %v179 = vsel %vm163, 1, 0
    %v180 = vsel %vm164, 1, 0
    %v181 = vsel %vm165, 1, 0
    %v182 = vsel %vm166, 1, 0
    %v183 = vsel %vm167, 1, 0
    %v184 = vsel %vm168, 1, 0
    %v185 = vsel %vm169, 1, 0
    %v186 = vsel %vm170, 1, 0
    %v187 = vsel %vm171, 1, 0
    %v188 = vsel %vm172, 1, 0
    %v189 = vsel %vm173, 1, 0
    %v190 = vcvt.s32.f32 %v174
    %v191 = vcvt.s32.f32 %v175
    %v192 = vcvt.s32.f32 %v176
    %v193 = vcvt.s32.f32 %v177
    %v194 = vcvt.s32.f32 %v178
    %v195 = vcvt.s32.f32 %v179
    %v196 = vcvt.s32.f32 %v180
    %v197 = vcvt.s32.f32 %v181
    %v198 = vcvt.s32.f32 %v182
    %v199 = vcvt.s32.f32 %v183
    %v200 = vcvt.s32.f32 %v184
    %v201 = vcvt.s32.f32 %v185
    %v202 = vcvt.s32.f32 %v186
    %v203 = vcvt.s32.f32 %v187
    %v204 = vcvt.s32.f32 %v188
    %v205 = vcvt.s32.f32 %v189
    %v206 = vld [vmem:[%s1] sm:$0xff]
    %v207 = vld [vmem:[%s1 + $0x8] sm:$0xff]
    %v208 = vld [vmem:[%s1 + $0x10] sm:$0xff]
    %v209 = vld [vmem:[%s1 + $0x18] sm:$0xff]
    %v210 = vld [vmem:[%s1 + $0x20] sm:$0xff]
    %v211 = vld [vmem:[%s1 + $0x28] sm:$0xff]
    %v212 = vld [vmem:[%s1 + $0x30] sm:$0xff]
    %v213 = vld [vmem:[%s1 + $0x38] sm:$0xff]
    %v214 = vld [vmem:[%s1 + $0x40] sm:$0xff]
    %v215 = vld [vmem:[%s1 + $0x48] sm:$0xff]
    %v216 = vld [vmem:[%s1 + $0x50] sm:$0xff]
    %v217 = vld [vmem:[%s1 + $0x58] sm:$0xff]
    %v218 = vld [vmem:[%s1 + $0x60] sm:$0xff]
    %v219 = vld [vmem:[%s1 + $0x68] sm:$0xff]
    %v220 = vld [vmem:[%s1 + $0x70] sm:$0xff]
    %v221 = vld [vmem:[%s1 + $0x78] sm:$0xff]
    %222 = vmatpush.msra.mxu0 %v221
    %223 = vmatpush.msra.mxu0 %v220
    %224 = vmatpush.msra.mxu0 %v219
    %225 = vmatpush.msra.mxu0 %v218
    %226 = vmatpush.msra.mxu0 %v217
    %227 = vmatpush.msra.mxu0 %v216
    %228 = vmatpush.msra.mxu0 %v215
    %229 = vmatpush.msra.mxu0 %v214
    %230 = vmatpush.msra.mxu0 %v213
    %231 = vmatpush.msra.mxu0 %v212
    %232 = vmatpush.msra.mxu0 %v211
    %233 = vmatpush.msra.mxu0 %v210
    %234 = vmatpush.msra.mxu0 %v209
    %235 = vmatpush.msra.mxu0 %v208
    %236 = vmatpush.msra.mxu0 %v207
    %237 = vmatpush.msra.mxu0 %v206
    %238 = vmatmul.f32.gmra.mxu0 %v190
    %v239 = vpop.f32.mrf.mxu0
    %v240 = vadd.f32 0.0, %v239
    %241 = vmatmul.f32.gmra.mxu0 %v191
    %v242 = vpop.f32.mrf.mxu0
    %v243 = vadd.f32 0.0, %v242
    %244 = vmatmul.f32.gmra.mxu0 %v192
    %v245 = vpop.f32.mrf.mxu0
    %v246 = vadd.f32 0.0, %v245
    %247 = vmatmul.f32.gmra.mxu0 %v193
    %v248 = vpop.f32.mrf.mxu0
    %v249 = vadd.f32 0.0, %v248
    %250 = vmatmul.f32.gmra.mxu0 %v194
    %v251 = vpop.f32.mrf.mxu0
    %v252 = vadd.f32 0.0, %v251
    %253 = vmatmul.f32.gmra.mxu0 %v195
    %v254 = vpop.f32.mrf.mxu0
    %v255 = vadd.f32 0.0, %v254
    %256 = vmatmul.f32.gmra.mxu0 %v196
    %v257 = vpop.f32.mrf.mxu0
    %v258 = vadd.f32 0.0, %v257
    %259 = vmatmul.f32.gmra.mxu0 %v197
    %v260 = vpop.f32.mrf.mxu0
    %v261 = vadd.f32 0.0, %v260
    %262 = vmatmul.f32.gmra.mxu0 %v198
    %v263 = vpop.f32.mrf.mxu0
    %v264 = vadd.f32 0.0, %v263
    %265 = vmatmul.f32.gmra.mxu0 %v199
    %v266 = vpop.f32.mrf.mxu0
    %v267 = vadd.f32 0.0, %v266
    %268 = vmatmul.f32.gmra.mxu0 %v200
    %v269 = vpop.f32.mrf.mxu0
    %v270 = vadd.f32 0.0, %v269
    %271 = vmatmul.f32.gmra.mxu0 %v201
    %v272 = vpop.f32.mrf.mxu0
    %v273 = vadd.f32 0.0, %v272
    %274 = vmatmul.f32.gmra.mxu0 %v202
    %v275 = vpop.f32.mrf.mxu0
    %v276 = vadd.f32 0.0, %v275
    %277 = vmatmul.f32.gmra.mxu0 %v203
    %v278 = vpop.f32.mrf.mxu0
    %v279 = vadd.f32 0.0, %v278
    %280 = vmatmul.f32.gmra.mxu0 %v204
    %v281 = vpop.f32.mrf.mxu0
    %v282 = vadd.f32 0.0, %v281
    %283 = vmatmul.f32.gmra.mxu0 %v205
    %v284 = vpop.f32.mrf.mxu0
    %v285 = vadd.f32 0.0, %v284
    %286 = vdwg.mxu0
    %287 = vst [vmem:[#allocation2] sm:$0xff] %v240
    %288 = vst [vmem:[#allocation2 + $0x8] sm:$0xff] %v243
    %289 = vst [vmem:[#allocation2 + $0x10] sm:$0xff] %v246
    %290 = vst [vmem:[#allocation2 + $0x18] sm:$0xff] %v249
    %291 = vst [vmem:[#allocation2 + $0x20] sm:$0xff] %v252
    %292 = vst [vmem:[#allocation2 + $0x28] sm:$0xff] %v255
    %293 = vst [vmem:[#allocation2 + $0x30] sm:$0xff] %v258
    %294 = vst [vmem:[#allocation2 + $0x38] sm:$0xff] %v261
    %295 = vst [vmem:[#allocation2 + $0x40] sm:$0xff] %v264
    %296 = vst [vmem:[#allocation2 + $0x48] sm:$0xff] %v267
    %297 = vst [vmem:[#allocation2 + $0x50] sm:$0xff] %v270
    %298 = vst [vmem:[#allocation2 + $0x58] sm:$0xff] %v273
    %299 = vst [vmem:[#allocation2 + $0x60] sm:$0xff] %v276
    %300 = vst [vmem:[#allocation2 + $0x68] sm:$0xff] %v279
    %301 = vst [vmem:[#allocation2 + $0x70] sm:$0xff] %v282
    %302 = vst [vmem:[#allocation2 + $0x78] sm:$0xff] %v285
    // Predicated region
    $region10: #{tpu_custom_call.1} parent=1 // pred_check
      _
    $region11: #{tpu_custom_call.1} parent=1 // pred_check_branch
      %304 = sbr.rel (0) target = $region13
    $region12: #{tpu_custom_call.1} parent=1 // pred_region
      %306 = vsyncadd [#allocation3], 0
      %s307 = sshll.u32 [#allocation2], 4
      %s308 = int_to_ptr.vmem [resolvable:$true] %s307
      %s309 = sshll.u32 %s2, 4
      %s310 = int_to_ptr.hbm [resolvable:$true] %s309
      %315 = dma.vmem_to_hbm [thread:$0]  %s308, 2048, %s310, [#allocation3], 128, 128, 8
    $region13: #{tpu_custom_call.1} parent=1 // pred_fallthru
      _
    // Predicated region
    $region14: #{tpu_custom_call.1} parent=1 // pred_check
      _
    $region15: #{tpu_custom_call.1} parent=1 // pred_check_branch
      %317 = sbr.rel (0) target = $region17
    $region16: #{tpu_custom_call.1} parent=1 // pred_region
      %319 = dma.done [#allocation3], 2048
    $region17: #{tpu_custom_call.1} parent=1 // pred_fallthru
      _
    %320 = vsyncpa [#allocation3], 1

</llo_original>
